<compile_context>
chip_gen: v6e
topology: v6e:2x2x1
jax: 0.10.0
libtpu: 0.0.40
codegen_flags: <defaults>
</compile_context>

<pallas_src>
import functools
import math

import jax
import jax.numpy as jnp
from jax import lax
from jax.experimental import pallas as pl
from jax.experimental.pallas import tpu as pltpu


def _round_up(v, m):
    return ((v + m - 1) // m) * m


# ---------------------------------------------------------------------------
# Pass 0 (prep), grid = (row blocks, col blocks):
#   a_bf16[i,j] = (adj * mask_train * mask_fixed)[i,j]     (single bf16 stream)
#   deg[i]      = rowsum(a)[i] + 1                         (self loop, no I)
#   d[i]        = rsqrt(deg)  (0 where deg <= 0, matching torch isinf->0)
#   z1[i]       = d[i] * (x[i] @ W1)                       (degree-scaled feats)
# ---------------------------------------------------------------------------
def _prep_kernel(adj_ref, mt_ref, mf_ref, x_ref, w1_ref,
                 a_out_ref, d_out_ref, z1_out_ref, deg_acc):
    j = pl.program_id(1)

    @pl.when(j == 0)
    def _():
        deg_acc[...] = jnp.zeros_like(deg_acc)

    am = adj_ref[...] * mt_ref[...] * mf_ref[...]              # (TM, TJ) f32
    a_out_ref[...] = am.astype(jnp.bfloat16)
    deg_acc[...] += jnp.sum(am, axis=1, keepdims=True)

    @pl.when(j == pl.num_programs(1) - 1)
    def _():
        deg = deg_acc[...] + 1.0                               # + self loop
        d = jnp.where(deg > 0.0, lax.rsqrt(deg), 0.0)          # (TM, 1)
        d_out_ref[...] = d
        xw = jnp.dot(x_ref[...], w1_ref[...],
                     preferred_element_type=jnp.float32)
        z1_out_ref[...] = (d * xw).astype(jnp.bfloat16)


# ---------------------------------------------------------------------------
# Pass 1 (gc1 aggregation + fused relu + h@W2), grid = (row blocks, red blocks):
#   acc_i = sum_k A[kblk, iblk]^T @ z1[kblk]        (bf16 MXU, f32 accumulate)
#   agg   = d_i * (acc_i + z1_i)                    (self-loop term, no I matrix)
#   h     = relu(agg + b1)                          (dropout: eval-mode identity)
#   z2_i  = d_i * (h @ W2)                          (fused; h never hits HBM)
# ---------------------------------------------------------------------------
def _gc1_kernel(a_ref, z1_ref, z1_self_ref, d_ref, b1_ref, w2_ref,
                z2_ref, acc_ref):
    k = pl.program_id(1)

    @pl.when(k == 0)
    def _():
        acc_ref[...] = jnp.zeros_like(acc_ref)

    acc_ref[...] += lax.dot_general(
        a_ref[...], z1_ref[...],
        dimension_numbers=(((0,), (0,)), ((), ())),    # A^T @ z1, no transpose
        preferred_element_type=jnp.float32)

    @pl.when(k == pl.num_programs(1) - 1)
    def _():
        d = d_ref[...]                                           # (TM, 1)
        agg = d * (acc_ref[...] + z1_self_ref[...].astype(jnp.float32))
        h = jnp.maximum(agg + b1_ref[...], 0.0)
        # dropout(p, training=False) -> identity in eval mode.
        # TODO(synk): training-mode dropout via pltpu.prng_seed/prng_random_bits.
        z2 = d * jnp.dot(h, w2_ref[...], preferred_element_type=jnp.float32)
        z2_ref[...] = z2.astype(jnp.bfloat16)


# ---------------------------------------------------------------------------
# Pass 2 (gc2 aggregation + bias + log_softmax):
#   acc_i  = sum_k A[kblk, iblk]^T @ z2[kblk]
#   logits = d_i * (acc_i + z2_i) + b2
#   out    = log_softmax(logits) over the real (unpadded) classes
# ---------------------------------------------------------------------------
def _gc2_kernel(a_ref, z2_ref, z2_self_ref, d_ref, b2_ref,
                out_ref, acc_ref, *, nclass):
    k = pl.program_id(1)

    @pl.when(k == 0)
    def _():
        acc_ref[...] = jnp.zeros_like(acc_ref)

    acc_ref[...] += lax.dot_general(
        a_ref[...], z2_ref[...],
        dimension_numbers=(((0,), (0,)), ((), ())),
        preferred_element_type=jnp.float32)

    @pl.when(k == pl.num_programs(1) - 1)
    def _():
        d = d_ref[...]
        logits = d * (acc_ref[...] + z2_self_ref[...].astype(jnp.float32))
        logits = logits + b2_ref[...]
        # Mask padded class columns so they do not affect max / sum.
        col = lax.broadcasted_iota(jnp.int32, logits.shape, 1)
        logits = jnp.where(col < nclass, logits, -1e30)
        m = jnp.max(logits, axis=1, keepdims=True)
        z = logits - m
        lse = jnp.log(jnp.sum(jnp.exp(z), axis=1, keepdims=True))
        out_ref[...] = (z - lse).astype(out_ref.dtype)


def ugs_gcn_forward(adj, mask_train, mask_fixed, x, w1, b1, w2, b2):
    N = adj.shape[0]
    F = x.shape[1]
    H = w1.shape[1]
    C = w2.shape[1]

    # Adaptive tiles: minimal padding for small graphs, big lane-dense tiles for
    # large ones.  TM is the node-row block, TK the adjacency reduction block.
    if N <= 128:
        Np = 128
        TM = TK = 128
    else:
        Np = _round_up(N, 256)
        TM = 256
        TK = 512 if Np % 512 == 0 else 256
    TJ = TK                                  # prep column tile (lane-dense)

    Fp = _round_up(F, 128)
    Hp = _round_up(H, 128)
    Cp = _round_up(C, 128)                   # lane-dense output slab

    f32 = jnp.float32
    adj_p = jnp.zeros((Np, Np), f32).at[:N, :N].set(adj.astype(f32))
    mt_p = jnp.zeros((Np, Np), f32).at[:N, :N].set(mask_train.astype(f32))
    mf_p = jnp.zeros((Np, Np), f32).at[:N, :N].set(mask_fixed.astype(f32))
    x_p = jnp.zeros((Np, Fp), f32).at[:N, :F].set(x.astype(f32))
    w1_p = jnp.zeros((Fp, Hp), f32).at[:F, :H].set(w1.astype(f32))
    b1_p = jnp.zeros((1, Hp), f32).at[0, :H].set(b1.astype(f32))
    w2_p = jnp.zeros((Hp, Cp), f32).at[:H, :C].set(w2.astype(f32))
    b2_p = jnp.zeros((1, Cp), f32).at[0, :C].set(b2.astype(f32))

    vmem_limit = 48 * 1024 * 1024   # above scoped defaults, below v7x physical

    # ---------------- pass 0: mask + bf16 cast + degrees + z1 ----------------
    a_bf16, d, z1 = pl.pallas_call(
        _prep_kernel,
        out_shape=(jax.ShapeDtypeStruct((Np, Np), jnp.bfloat16),
                   jax.ShapeDtypeStruct((Np, 1), jnp.float32),
                   jax.ShapeDtypeStruct((Np, Hp), jnp.bfloat16)),
        grid_spec=pltpu.PrefetchScalarGridSpec(
            num_scalar_prefetch=0,
            grid=(Np // TM, Np // TJ),
            in_specs=[
                pl.BlockSpec((TM, TJ), lambda i, j: (i, j)),   # adj
                pl.BlockSpec((TM, TJ), lambda i, j: (i, j)),   # mask_train
                pl.BlockSpec((TM, TJ), lambda i, j: (i, j)),   # mask_fixed
                pl.BlockSpec((TM, Fp), lambda i, j: (i, 0)),   # x
                pl.BlockSpec((Fp, Hp), lambda i, j: (0, 0)),   # W1
            ],
            out_specs=[
                pl.BlockSpec((TM, TJ), lambda i, j: (i, j)),   # A (bf16)
                pl.BlockSpec((TM, 1), lambda i, j: (i, 0)),    # d
                pl.BlockSpec((TM, Hp), lambda i, j: (i, 0)),   # z1
            ],
            scratch_shapes=[pltpu.VMEM((TM, 1), jnp.float32)]),
        compiler_params=pltpu.CompilerParams(
            dimension_semantics=("parallel", "arbitrary"),
            vmem_limit_bytes=vmem_limit),
    )(adj_p, mt_p, mf_p, x_p, w1_p)

    agg_params = pltpu.CompilerParams(
        dimension_semantics=("parallel", "arbitrary"),
        vmem_limit_bytes=vmem_limit)
    grid = (Np // TM, Np // TK)

    # ---------------- pass 1: gc1 aggregation + relu + fused h@W2 ------------
    z2 = pl.pallas_call(
        _gc1_kernel,
        out_shape=jax.ShapeDtypeStruct((Np, Cp), jnp.bfloat16),
        grid_spec=pltpu.PrefetchScalarGridSpec(
            num_scalar_prefetch=0,
            grid=grid,
            in_specs=[
                pl.BlockSpec((TK, TM), lambda i, k: (k, i)),   # A[kblk, iblk]
                pl.BlockSpec((TK, Hp), lambda i, k: (k, 0)),   # z1[kblk]
                pl.BlockSpec((TM, Hp), lambda i, k: (i, 0)),   # z1[iblk] (self)
                pl.BlockSpec((TM, 1), lambda i, k: (i, 0)),    # d[iblk]
                pl.BlockSpec((1, Hp), lambda i, k: (0, 0)),    # b1
                pl.BlockSpec((Hp, Cp), lambda i, k: (0, 0)),   # W2
            ],
            out_specs=pl.BlockSpec((TM, Cp), lambda i, k: (i, 0)),
            scratch_shapes=[pltpu.VMEM((TM, Hp), jnp.float32)]),
        compiler_params=agg_params,
    )(a_bf16, z1, z1, d, b1_p, w2_p)

    # ---------------- pass 2: gc2 aggregation + bias + log_softmax -----------
    out_p = pl.pallas_call(
        functools.partial(_gc2_kernel, nclass=C),
        out_shape=jax.ShapeDtypeStruct((Np, Cp), jnp.float32),
        grid_spec=pltpu.PrefetchScalarGridSpec(
            num_scalar_prefetch=0,
            grid=grid,
            in_specs=[
                pl.BlockSpec((TK, TM), lambda i, k: (k, i)),   # A[kblk, iblk]
                pl.BlockSpec((TK, Cp), lambda i, k: (k, 0)),   # z2[kblk]
                pl.BlockSpec((TM, Cp), lambda i, k: (i, 0)),   # z2[iblk] (self)
                pl.BlockSpec((TM, 1), lambda i, k: (i, 0)),    # d[iblk]
                pl.BlockSpec((1, Cp), lambda i, k: (0, 0)),    # b2
            ],
            out_specs=pl.BlockSpec((TM, Cp), lambda i, k: (i, 0)),
            scratch_shapes=[pltpu.VMEM((TM, Cp), jnp.float32)]),
        compiler_params=agg_params,
    )(a_bf16, z2, z2, d, b2_p)

    return out_p[:N, :C]


if __name__ == "__main__":
    key = jax.random.PRNGKey(0)
    N, nfeat, nhid, nclass = 16, 32, 32, 8
    k1, k2, k3, k4, k5, k6 = jax.random.split(key, 6)

    # deterministic symmetric binary adjacency (no self loops; normalize adds them)
    a = (jax.random.uniform(k1, (N, N)) < 0.3).astype(jnp.float32)
    adj = jnp.maximum(a, a.T) * (1.0 - jnp.eye(N, dtype=jnp.float32))

    # generate_adj_mask: ones exactly at nonzero positions of adj
    mask_train = (adj != 0).astype(jnp.float32)
    mask_fixed = (adj != 0).astype(jnp.float32)

    x = jax.random.normal(k2, (N, nfeat), jnp.float32)

    # GraphConvolution-style uniform init: U(-1/sqrt(out), 1/sqrt(out))
    stdv1 = 1.0 / math.sqrt(nhid)
    w1 = jax.random.uniform(k3, (nfeat, nhid), jnp.float32, -stdv1, stdv1)
    b1 = jax.random.uniform(k4, (nhid,), jnp.float32, -stdv1, stdv1)
    stdv2 = 1.0 / math.sqrt(nclass)
    w2 = jax.random.uniform(k5, (nhid, nclass), jnp.float32, -stdv2, stdv2)
    b2 = jax.random.uniform(k6, (nclass,), jnp.float32, -stdv2, stdv2)

    out = ugs_gcn_forward(adj, mask_train, mask_fixed, x, w1, b1, w2, b2)
    out = jax.block_until_ready(out)
    assert out.shape == (N, nclass)
    assert bool(jnp.all(jnp.isfinite(out)))

    # pure-JAX f32 reference of the original torch math (loose tol: bf16 streams)
    def reference(adj, mt, mf, x, w1, b1, w2, b2):
        a_ref = adj * mt * mf + jnp.eye(adj.shape[0], dtype=jnp.float32)
        rowsum = a_ref.sum(1, keepdims=True)
        dis = jnp.where(rowsum > 0, 1.0 / jnp.sqrt(rowsum), 0.0)
        a_norm = (a_ref * dis.reshape(1, -1)).T * dis.reshape(1, -1)
        h = jax.nn.relu(a_norm @ (x @ w1) + b1)
        y = a_norm @ (h @ w2) + b2
        return jax.nn.log_softmax(y, axis=1)

    ref = reference(adj, mask_train, mask_fixed, x, w1, b1, w2, b2)
    err = float(jnp.max(jnp.abs(out - ref)))
    assert err < 5e-2, f"max abs err {err}"
    print("KERNEL_OK")
</pallas_src>

<mosaic_0001>
module attributes {stable_mosaic.version = 11 : i64} {
  func.func @_prep_kernel(%arg0: i32, %arg1: i32, %arg2: memref<128x128xf32, #tpu.memory_space<vmem>>, %arg3: memref<128x128xf32, #tpu.memory_space<vmem>>, %arg4: memref<128x128xf32, #tpu.memory_space<vmem>>, %arg5: memref<128x128xf32, #tpu.memory_space<vmem>>, %arg6: memref<128x128xf32, #tpu.memory_space<vmem>>, %arg7: memref<128x128xbf16, #tpu.memory_space<vmem>>, %arg8: memref<128x1xf32, #tpu.memory_space<vmem>>, %arg9: memref<128x128xbf16, #tpu.memory_space<vmem>>, %arg10: memref<128x1xf32, #tpu.memory_space<vmem>>) attributes {dimension_semantics = [#tpu.dimension_semantics<parallel>, #tpu.dimension_semantics<arbitrary>], iteration_bounds = array<i64: 1, 1>, scalar_prefetch = 0 : i64, scratch_operands = 1 : i64, tpu.core_type = #tpu.core_type<tc>, window_params = [{transform_indices = @transform_0, window_bounds = array<i64: 128, 128>}, {transform_indices = @transform_1, window_bounds = array<i64: 128, 128>}, {transform_indices = @transform_2, window_bounds = array<i64: 128, 128>}, {transform_indices = @transform_3, window_bounds = array<i64: 128, 128>}, {pipeline_mode = #tpu.pipeline_mode<synchronous>, transform_indices = @transform_4, window_bounds = array<i64: 128, 128>}, {transform_indices = @transform_5, window_bounds = array<i64: 128, 128>}, {transform_indices = @transform_6, window_bounds = array<i64: 128, 1>}, {transform_indices = @transform_7, window_bounds = array<i64: 128, 128>}]} {
    %c0_i32 = arith.constant 0 : i32
    %0 = arith.cmpi eq, %arg1, %c0_i32 : i32
    %1 = arith.extui %0 : i1 to i32
    %c0_i32_0 = arith.constant 0 : i32
    %2 = arith.cmpi ne, %1, %c0_i32_0 : i32
    scf.if %2 {
      %cst_14 = arith.constant 0.000000e+00 : f32
      %18 = vector.broadcast %cst_14 : f32 to vector<128x1xf32>
      %c0_15 = arith.constant 0 : index
      %c0_16 = arith.constant 0 : index
      %19 = vector.load %arg10[%c0_15, %c0_16] : memref<128x1xf32, #tpu.memory_space<vmem>>, vector<128x1xf32>
      tpu.vector_store %arg10[%c0_15, %c0_16], %18 {strides = array<i32>} : memref<128x1xf32, #tpu.memory_space<vmem>>, vector<128x1xf32>,
    } else {
    }
    %c0 = arith.constant 0 : index
    %c0_1 = arith.constant 0 : index
    %3 = vector.load %arg2[%c0, %c0_1] : memref<128x128xf32, #tpu.memory_space<vmem>>, vector<128x128xf32>
    %c0_2 = arith.constant 0 : index
    %c0_3 = arith.constant 0 : index
    %4 = vector.load %arg3[%c0_2, %c0_3] : memref<128x128xf32, #tpu.memory_space<vmem>>, vector<128x128xf32>
    %5 = arith.mulf %3, %4 : vector<128x128xf32>
    %c0_4 = arith.constant 0 : index
    %c0_5 = arith.constant 0 : index
    %6 = vector.load %arg4[%c0_4, %c0_5] : memref<128x128xf32, #tpu.memory_space<vmem>>, vector<128x128xf32>
    %7 = arith.mulf %5, %6 : vector<128x128xf32>
    %8 = arith.truncf %7 : vector<128x128xf32> to vector<128x128xbf16>
    %c0_6 = arith.constant 0 : index
    %c0_7 = arith.constant 0 : index
    %9 = vector.load %arg7[%c0_6, %c0_7] : memref<128x128xbf16, #tpu.memory_space<vmem>>, vector<128x128xbf16>
    tpu.vector_store %arg7[%c0_6, %c0_7], %8 {strides = array<i32>} : memref<128x128xbf16, #tpu.memory_space<vmem>>, vector<128x128xbf16>,
    %c0_8 = arith.constant 0 : index
    %c0_9 = arith.constant 0 : index
    %10 = vector.load %arg10[%c0_8, %c0_9] : memref<128x1xf32, #tpu.memory_space<vmem>>, vector<128x1xf32>
    %cst = arith.constant dense<0.000000e+00> : vector<128xf32>
    %11 = vector.multi_reduction <add>, %7, %cst [1] : vector<128x128xf32> to vector<128xf32>
    %12 = vector.shape_cast %11 : vector<128xf32> to vector<128x1xf32>
    %13 = arith.addf %10, %12 : vector<128x1xf32>
    %c0_10 = arith.constant 0 : index
    %c0_11 = arith.constant 0 : index
    %14 = vector.load %arg10[%c0_10, %c0_11] : memref<128x1xf32, #tpu.memory_space<vmem>>, vector<128x1xf32>
    tpu.vector_store %arg10[%c0_10, %c0_11], %13 {strides = array<i32>} : memref<128x1xf32, #tpu.memory_space<vmem>>, vector<128x1xf32>,
    %c0_i32_12 = arith.constant 0 : i32
    %15 = arith.cmpi eq, %arg1, %c0_i32_12 : i32
    %16 = arith.extui %15 : i1 to i32
    %c0_i32_13 = arith.constant 0 : i32
    %17 = arith.cmpi ne, %16, %c0_i32_13 : i32
    scf.if %17 {
      %c0_14 = arith.constant 0 : index
      %c0_15 = arith.constant 0 : index
      %18 = vector.load %arg10[%c0_14, %c0_15] : memref<128x1xf32, #tpu.memory_space<vmem>>, vector<128x1xf32>
      %cst_16 = arith.constant 1.000000e+00 : f32
      %19 = vector.broadcast %cst_16 : f32 to vector<128x1xf32>
      %20 = arith.addf %18, %19 : vector<128x1xf32>
      %cst_17 = arith.constant 0.000000e+00 : f32
      %21 = vector.broadcast %cst_17 : f32 to vector<128x1xf32>
      %22 = arith.cmpf ogt, %20, %21 : vector<128x1xf32>
      %23 = math.rsqrt %20 : vector<128x1xf32>
      %cst_18 = arith.constant 0.000000e+00 : f32
      %24 = vector.broadcast %cst_18 : f32 to vector<128x1xf32>
      %25 = arith.select %22, %23, %24 : vector<128x1xi1>, vector<128x1xf32>
      %c0_19 = arith.constant 0 : index
      %c0_20 = arith.constant 0 : index
      %26 = vector.load %arg8[%c0_19, %c0_20] : memref<128x1xf32, #tpu.memory_space<vmem>>, vector<128x1xf32>
      tpu.vector_store %arg8[%c0_19, %c0_20], %25 {strides = array<i32>} : memref<128x1xf32, #tpu.memory_space<vmem>>, vector<128x1xf32>,
      %c0_21 = arith.constant 0 : index
      %c0_22 = arith.constant 0 : index
      %27 = vector.load %arg5[%c0_21, %c0_22] : memref<128x128xf32, #tpu.memory_space<vmem>>, vector<128x128xf32>
      %c0_23 = arith.constant 0 : index
      %c0_24 = arith.constant 0 : index
      %28 = vector.load %arg6[%c0_23, %c0_24] : memref<128x128xf32, #tpu.memory_space<vmem>>, vector<128x128xf32>
      %cst_25 = arith.constant dense<0.000000e+00> : vector<128x128xf32>
      %29 = tpu.matmul %27, %28, %cst_25 {dimension_numbers = #tpu.dot_dimension_numbers<[1], [0], [0], [1], [0, 0, 1, 1], [], []>} : vector<128x128xf32>, vector<128x128xf32>, vector<128x128xf32> -> vector<128x128xf32>
      %30 = vector.broadcast %25 : vector<128x1xf32> to vector<128x128xf32>
      %31 = arith.mulf %30, %29 : vector<128x128xf32>
      %32 = arith.truncf %31 : vector<128x128xf32> to vector<128x128xbf16>
      %c0_26 = arith.constant 0 : index
      %c0_27 = arith.constant 0 : index
      %33 = vector.load %arg9[%c0_26, %c0_27] : memref<128x128xbf16, #tpu.memory_space<vmem>>, vector<128x128xbf16>
      tpu.vector_store %arg9[%c0_26, %c0_27], %32 {strides = array<i32>} : memref<128x128xbf16, #tpu.memory_space<vmem>>, vector<128x128xbf16>,
    } else {
    }
    return
  }
  func.func @transform_0(%arg0: i32, %arg1: i32) -> (i32, i32) {
    %c0_i32 = arith.constant 0 : i32
    return %arg0, %arg1 : i32, i32
  }
  func.func @transform_1(%arg0: i32, %arg1: i32) -> (i32, i32) {
    %c0_i32 = arith.constant 0 : i32
    return %arg0, %arg1 : i32, i32
  }
  func.func @transform_2(%arg0: i32, %arg1: i32) -> (i32, i32) {
    %c0_i32 = arith.constant 0 : i32
    return %arg0, %arg1 : i32, i32
  }
  func.func @transform_3(%arg0: i32, %arg1: i32) -> (i32, i32) {
    %c0_i32 = arith.constant 0 : i32
    %c0_i32_0 = arith.constant 0 : i32
    return %arg0, %c0_i32 : i32, i32
  }
  func.func @transform_4(%arg0: i32, %arg1: i32) -> (i32, i32) {
    %c0_i32 = arith.constant 0 : i32
    %c0_i32_0 = arith.constant 0 : i32
    %c0_i32_1 = arith.constant 0 : i32
    return %c0_i32, %c0_i32_0 : i32, i32
  }
  func.func @transform_5(%arg0: i32, %arg1: i32) -> (i32, i32) {
    %c0_i32 = arith.constant 0 : i32
    return %arg0, %arg1 : i32, i32
  }
  func.func @transform_6(%arg0: i32, %arg1: i32) -> (i32, i32) {
    %c0_i32 = arith.constant 0 : i32
    %c0_i32_0 = arith.constant 0 : i32
    return %arg0, %c0_i32 : i32, i32
  }
  func.func @transform_7(%arg0: i32, %arg1: i32) -> (i32, i32) {
    %c0_i32 = arith.constant 0 : i32
    %c0_i32_0 = arith.constant 0 : i32
    return %arg0, %c0_i32 : i32, i32
  }
}

</mosaic_0001>

<llo_original>
// kernel: tpu_custom_call.1
$region0: #{tpu_custom_call.1}
  #allocation0 [shape = 'u32[]', space=smem, size = 0x4, offset = 0x4, fixed_abs, tag = 'smem constant byte address 0x4 - core index']
  #allocation1 [shape = 'u32[144,128]{1,0:T(1,128)}', space=vmem, size = 0x12000, scoped, tag = 'internal scratch']
  #allocation2 [shape = 'f32[128,1]{1,0:T(8,128)}', space=vmem, size = 0x10000, scoped, tag = 'scratch operand']
  %s0 = inlined_call_operand.hbm [shape: f32[128,128], index: 0, kind: input, shape index: {}]
  %s1 = inlined_call_operand.hbm [shape: f32[128,128], index: 1, kind: input, shape index: {}]
  %s2 = inlined_call_operand.hbm [shape: f32[128,128], index: 2, kind: input, shape index: {}]
  %s3 = inlined_call_operand.hbm [shape: f32[128,128], index: 3, kind: input, shape index: {}]
  %s4 = inlined_call_operand.hbm [shape: f32[128,128], index: 4, kind: input, shape index: {}]
  %s5 = inlined_call_operand.hbm [shape: bf16[128,128], index: 5, kind: output, shape index: {0}]
  %s6 = inlined_call_operand.vmem [shape: f32[128,1], index: 6, kind: output, shape index: {1}]
  %s7 = inlined_call_operand.hbm [shape: bf16[128,128], index: 7, kind: output, shape index: {2}]
  %8 = xla_tuple %s5, %s6, %s7
  %s9 = sld [smem:[#allocation0]]
  $region74: #{tpu_custom_call.1} parent=0
    _
  %s11 = ssub.s32 1, %s9
  %s12 = scalar_select 0, %s11, %s9
  $region1: #{tpu_custom_call.1} parent=0
    #allocation3 [shape = 'u8[65536]{0}', space=vmem, size = 0x10000, scoped, tag = 'input window, operand 0, single buffered']
    #allocation4 [shape = 's32[1]{0}', space=sflag, size = 0x4, scoped, tag = 'scoped memory for tpu_custom_call.1']
    #allocation5 [shape = 's32[1]{0}', space=sflag, size = 0x4, scoped, tag = 'scoped memory for tpu_custom_call.1']
    #allocation6 [shape = 'u8[65536]{0}', space=vmem, size = 0x10000, scoped, tag = 'input window, operand 1, single buffered']
    #allocation7 [shape = 's32[1]{0}', space=sflag, size = 0x4, scoped, tag = 'scoped memory for tpu_custom_call.1']
    #allocation8 [shape = 'u8[65536]{0}', space=vmem, size = 0x10000, scoped, tag = 'input window, operand 2, single buffered']
    #allocation9 [shape = 'u8[65536]{0}', space=vmem, size = 0x10000, scoped, tag = 'input window, operand 3, single buffered']
    #allocation10 [shape = 's32[1]{0}', space=sflag, size = 0x4, scoped, tag = 'scoped memory for tpu_custom_call.1']
    #allocation11 [shape = 'u8[65536]{0}', space=vmem, size = 0x10000, scoped, tag = 'input window, operand 4, single buffered']
    #allocation12 [shape = 'u8[32768]{0}', space=vmem, size = 0x8000, scoped, tag = 'output window, operand 0, single buffered']
    #allocation13 [shape = 'u8[32768]{0}', space=vmem, size = 0x8000, scoped, tag = 'output window, operand 2, single buffered']
    #allocation14 [shape = 's32[1]{0}', space=sflag, size = 0x4, scoped, tag = 'scoped memory for tpu_custom_call.1']
    %13 = vsyncpa [#allocation4], 0
    %14 = vsyncpa [#allocation7], 0
    %15 = vsyncpa [#allocation10], 0
    %16 = vsyncpa [#allocation5], 0
    %17 = vsyncpa [#allocation14], 0
    // Predicated region
    $region2: #{tpu_custom_call.1} parent=1 // pred_check
      _
    $region3: #{tpu_custom_call.1} parent=1 // pred_check_branch
      %19 = sbr.rel (0) target = $region5
    $region4: #{tpu_custom_call.1} parent=1 // pred_region
      %s21 = ssub.s32 2048, 2048
      %22 = vsyncadd [#allocation4], %s21
      %s23 = sshll.u32 [#allocation3], 4
      %s24 = int_to_ptr.vmem [resolvable:$true] %s23
      %29 = dma.hbm_to_vmem [thread:$0]  %s0, 2048, %s24, [#allocation4], 128, 128, 8
    $region5: #{tpu_custom_call.1} parent=1 // pred_fallthru
      _
    // Predicated region
    $region6: #{tpu_custom_call.1} parent=1 // pred_check
      _
    $region7: #{tpu_custom_call.1} parent=1 // pred_check_branch
      %31 = sbr.rel (0) target = $region9
    $region8: #{tpu_custom_call.1} parent=1 // pred_region
      %s33 = ssub.s32 2048, 2048
      %34 = vsyncadd [#allocation7], %s33
      %s35 = sshll.u32 [#allocation6], 4
      %s36 = int_to_ptr.vmem [resolvable:$true] %s35
      %41 = dma.hbm_to_vmem [thread:$0]  %s1, 2048, %s36, [#allocation7], 128, 128, 8
    $region9: #{tpu_custom_call.1} parent=1 // pred_fallthru
      _
    // Predicated region
    $region10: #{tpu_custom_call.1} parent=1 // pred_check
      _
    $region11: #{tpu_custom_call.1} parent=1 // pred_check_branch
      %43 = sbr.rel (0) target = $region13
    $region12: #{tpu_custom_call.1} parent=1 // pred_region
      %s45 = ssub.s32 2048, 2048
      %46 = vsyncadd [#allocation7], %s45
      %s47 = sshll.u32 [#allocation8], 4
      %s48 = int_to_ptr.vmem [resolvable:$true] %s47
      %53 = dma.hbm_to_vmem [thread:$0]  %s2, 2048, %s48, [#allocation7], 128, 128, 8
    $region13: #{tpu_custom_call.1} parent=1 // pred_fallthru
      _
    // Predicated region
    $region14: #{tpu_custom_call.1} parent=1 // pred_check
      _
    $region15: #{tpu_custom_call.1} parent=1 // pred_check_branch
      %55 = sbr.rel (0) target = $region17
    $region16: #{tpu_custom_call.1} parent=1 // pred_region
      %s57 = ssub.s32 2048, 2048
      %58 = vsyncadd [#allocation10], %s57
      %s59 = sshll.u32 [#allocation9], 4
      %s60 = int_to_ptr.vmem [resolvable:$true] %s59
      %65 = dma.hbm_to_vmem [thread:$0]  %s3, 2048, %s60, [#allocation10], 128, 128, 8
    $region17: #{tpu_custom_call.1} parent=1 // pred_fallthru
      _
    // Predicated region
    $region18: #{tpu_custom_call.1} parent=1 // pred_check
      _
    $region19: #{tpu_custom_call.1} parent=1 // pred_check_branch
      %67 = sbr.rel (0) target = $region21
    $region20: #{tpu_custom_call.1} parent=1 // pred_region
      %s69 = ssub.s32 2048, 2048
      %70 = vsyncadd [#allocation10], %s69
      %s71 = sshll.u32 [#allocation11], 4
      %s72 = int_to_ptr.vmem [resolvable:$true] %s71
      %77 = dma.hbm_to_vmem [thread:$0]  %s4, 2048, %s72, [#allocation10], 128, 128, 8
    $region21: #{tpu_custom_call.1} parent=1 // pred_fallthru
      _
    // Predicated region
    $region22: #{tpu_custom_call.1} parent=1 // pred_check
      _
    $region23: #{tpu_custom_call.1} parent=1 // pred_check_branch
      %79 = sbr.rel (0) target = $region25
    $region24: #{tpu_custom_call.1} parent=1 // pred_region
      %80 = dma.done [#allocation4], 2048
    $region25: #{tpu_custom_call.1} parent=1 // pred_fallthru
      _
    // Predicated region
    $region26: #{tpu_custom_call.1} parent=1 // pred_check
      _
    $region27: #{tpu_custom_call.1} parent=1 // pred_check_branch
      %82 = sbr.rel (0) target = $region29
    $region28: #{tpu_custom_call.1} parent=1 // pred_region
      %83 = dma.done [#allocation7], 2048
    $region29: #{tpu_custom_call.1} parent=1 // pred_fallthru
      _
    // Predicated region
    $region30: #{tpu_custom_call.1} parent=1 // pred_check
      _
    $region31: #{tpu_custom_call.1} parent=1 // pred_check_branch
      %85 = sbr.rel (0) target = $region33
    $region32: #{tpu_custom_call.1} parent=1 // pred_region
      %86 = dma.done [#allocation7], 2048
    $region33: #{tpu_custom_call.1} parent=1 // pred_fallthru
      _
    // Predicated region
    $region34: #{tpu_custom_call.1} parent=1 // pred_check
      _
    $region35: #{tpu_custom_call.1} parent=1 // pred_check_branch
      %88 = sbr.rel (0) target = $region37
    $region36: #{tpu_custom_call.1} parent=1 // pred_region
      %89 = dma.done [#allocation10], 2048
    $region37: #{tpu_custom_call.1} parent=1 // pred_fallthru
      _
    // Predicated region
    $region38: #{tpu_custom_call.1} parent=1 // pred_check
      _
    $region39: #{tpu_custom_call.1} parent=1 // pred_check_branch
      %91 = sbr.rel (0) target = $region41
    $region40: #{tpu_custom_call.1} parent=1 // pred_region
      %92 = dma.done [#allocation10], 2048
    $region41: #{tpu_custom_call.1} parent=1 // pred_fallthru
      _
    %p93 = scmp.eq.s32.totalorder 0, 0
    // Predicated region
    $region42: #{tpu_custom_call.1} parent=1 // pred_check
      %p94 = pneg %p93
    $region43: #{tpu_custom_call.1} parent=1 // pred_check_branch
      %96 = sbr.rel (%p94) target = $region45
    $region44: #{tpu_custom_call.1} parent=1 // pred_region
      %vm97 = vcmask 7168
      %98 = vst.msk [vmem:[#allocation2] sm:$0xff] %vm97, 0.0
      %99 = vst.msk [vmem:[#allocation2 + $0x8] sm:$0xff] %vm97, 0.0
      %100 = vst.msk [vmem:[#allocation2 + $0x10] sm:$0xff] %vm97, 0.0
      %101 = vst.msk [vmem:[#allocation2 + $0x18] sm:$0xff] %vm97, 0.0
      %102 = vst.msk [vmem:[#allocation2 + $0x20] sm:$0xff] %vm97, 0.0
      %103 = vst.msk [vmem:[#allocation2 + $0x28] sm:$0xff] %vm97, 0.0
      %104 = vst.msk [vmem:[#allocation2 + $0x30] sm:$0xff] %vm97, 0.0
      %105 = vst.msk [vmem:[#allocation2 + $0x38] sm:$0xff] %vm97, 0.0
      %106 = vst.msk [vmem:[#allocation2 + $0x40] sm:$0xff] %vm97, 0.0
      %107 = vst.msk [vmem:[#allocation2 + $0x48] sm:$0xff] %vm97, 0.0
      %108 = vst.msk [vmem:[#allocation2 + $0x50] sm:$0xff] %vm97, 0.0
      %109 = vst.msk [vmem:[#allocation2 + $0x58] sm:$0xff] %vm97, 0.0
      %110 = vst.msk [vmem:[#allocation2 + $0x60] sm:$0xff] %vm97, 0.0
      %111 = vst.msk [vmem:[#allocation2 + $0x68] sm:$0xff] %vm97, 0.0
      %112 = vst.msk [vmem:[#allocation2 + $0x70] sm:$0xff] %vm97, 0.0
      %113 = vst.msk [vmem:[#allocation2 + $0x78] sm:$0xff] %vm97, 0.0
    $region45: #{tpu_custom_call.1} parent=1 // pred_fallthru
      _
    %v114 = vld [vmem:[#allocation3] sm:$0xff]
    %v115 = vld [vmem:[#allocation3 + $0x8] sm:$0xff]
    %v116 = vld [vmem:[#allocation3 + $0x10] sm:$0xff]
    %v117 = vld [vmem:[#allocation3 + $0x18] sm:$0xff]
    %v118 = vld [vmem:[#allocation3 + $0x20] sm:$0xff]
    %v119 = vld [vmem:[#allocation3 + $0x28] sm:$0xff]
    %v120 = vld [vmem:[#allocation3 + $0x30] sm:$0xff]
    %v121 = vld [vmem:[#allocation3 + $0x38] sm:$0xff]
    %v122 = vld [vmem:[#allocation3 + $0x40] sm:$0xff]
    %v123 = vld [vmem:[#allocation3 + $0x48] sm:$0xff]
    %v124 = vld [vmem:[#allocation3 + $0x50] sm:$0xff]
    %v125 = vld [vmem:[#allocation3 + $0x58] sm:$0xff]
    %v126 = vld [vmem:[#allocation3 + $0x60] sm:$0xff]
    %v127 = vld [vmem:[#allocation3 + $0x68] sm:$0xff]
    %v128 = vld [vmem:[#allocation3 + $0x70] sm:$0xff]
    %v129 = vld [vmem:[#allocation3 + $0x78] sm:$0xff]
    %v130 = vld [vmem:[#allocation6] sm:$0xff]
    %v131 = vld [vmem:[#allocation6 + $0x8] sm:$0xff]
    %v132 = vld [vmem:[#allocation6 + $0x10] sm:$0xff]
    %v133 = vld [vmem:[#allocation6 + $0x18] sm:$0xff]
    %v134 = vld [vmem:[#allocation6 + $0x20] sm:$0xff]
    %v135 = vld [vmem:[#allocation6 + $0x28] sm:$0xff]
    %v136 = vld [vmem:[#allocation6 + $0x30] sm:$0xff]
    %v137 = vld [vmem:[#allocation6 + $0x38] sm:$0xff]
    %v138 = vld [vmem:[#allocation6 + $0x40] sm:$0xff]
    %v139 = vld [vmem:[#allocation6 + $0x48] sm:$0xff]
    %v140 = vld [vmem:[#allocation6 + $0x50] sm:$0xff]
    %v141 = vld [vmem:[#allocation6 + $0x58] sm:$0xff]
    %v142 = vld [vmem:[#allocation6 + $0x60] sm:$0xff]
    %v143 = vld [vmem:[#allocation6 + $0x68] sm:$0xff]
    %v144 = vld [vmem:[#allocation6 + $0x70] sm:$0xff]
    %v145 = vld [vmem:[#allocation6 + $0x78] sm:$0xff]
    %v146 = vmul.f32 %v114, %v130
    %v147 = vmul.f32 %v115, %v131
    %v148 = vmul.f32 %v116, %v132
    %v149 = vmul.f32 %v117, %v133
    %v150 = vmul.f32 %v118, %v134
    %v151 = vmul.f32 %v119, %v135
    %v152 = vmul.f32 %v120, %v136
    %v153 = vmul.f32 %v121, %v137
    %v154 = vmul.f32 %v122, %v138
    %v155 = vmul.f32 %v123, %v139
    %v156 = vmul.f32 %v124, %v140
    %v157 = vmul.f32 %v125, %v141
    %v158 = vmul.f32 %v126, %v142
    %v159 = vmul.f32 %v127, %v143
    %v160 = vmul.f32 %v128, %v144
    %v161 = vmul.f32 %v129, %v145
    %v162 = vld [vmem:[#allocation8] sm:$0xff]
    %v163 = vld [vmem:[#allocation8 + $0x8] sm:$0xff]
    %v164 = vld [vmem:[#allocation8 + $0x10] sm:$0xff]
    %v165 = vld [vmem:[#allocation8 + $0x18] sm:$0xff]
    %v166 = vld [vmem:[#allocation8 + $0x20] sm:$0xff]
    %v167 = vld [vmem:[#allocation8 + $0x28] sm:$0xff]
    %v168 = vld [vmem:[#allocation8 + $0x30] sm:$0xff]
    %v169 = vld [vmem:[#allocation8 + $0x38] sm:$0xff]
    %v170 = vld [vmem:[#allocation8 + $0x40] sm:$0xff]
    %v171 = vld [vmem:[#allocation8 + $0x48] sm:$0xff]
    %v172 = vld [vmem:[#allocation8 + $0x50] sm:$0xff]
    %v173 = vld [vmem:[#allocation8 + $0x58] sm:$0xff]
    %v174 = vld [vmem:[#allocation8 + $0x60] sm:$0xff]
    %v175 = vld [vmem:[#allocation8 + $0x68] sm:$0xff]
    %v176 = vld [vmem:[#allocation8 + $0x70] sm:$0xff]
    %v177 = vld [vmem:[#allocation8 + $0x78] sm:$0xff]
    %v178 = vmul.f32 %v146, %v162
    %v179 = vmul.f32 %v147, %v163
    %v180 = vmul.f32 %v148, %v164
    %v181 = vmul.f32 %v149, %v165
    %v182 = vmul.f32 %v150, %v166
    %v183 = vmul.f32 %v151, %v167
    %v184 = vmul.f32 %v152, %v168
    %v185 = vmul.f32 %v153, %v169
    %v186 = vmul.f32 %v154, %v170
    %v187 = vmul.f32 %v155, %v171
    %v188 = vmul.f32 %v156, %v172
    %v189 = vmul.f32 %v157, %v173
    %v190 = vmul.f32 %v158, %v174
    %v191 = vmul.f32 %v159, %v175
    %v192 = vmul.f32 %v160, %v176
    %v193 = vmul.f32 %v161, %v177
    %v194 = vpack.c.bf16 %v179, %v178
    %v195 = vpack.c.bf16 %v181, %v180
    %v196 = vpack.c.bf16 %v183, %v182
    %v197 = vpack.c.bf16 %v185, %v184
    %v198 = vpack.c.bf16 %v187, %v186
    %v199 = vpack.c.bf16 %v189, %v188
    %v200 = vpack.c.bf16 %v191, %v190
    %v201 = vpack.c.bf16 %v193, %v192
    %v210 = vunpack.c.l.b16 %v194
    %v211 = vunpack.c.h.b16 %v194
    %v212 = vunpack.c.l.b16 %v195
    %v213 = vunpack.c.h.b16 %v195
    %v214 = vunpack.c.l.b16 %v196
    %v215 = vunpack.c.h.b16 %v196
    %v216 = vunpack.c.l.b16 %v197
    %v217 = vunpack.c.h.b16 %v197
    %v218 = vunpack.c.l.b16 %v198
    %v219 = vunpack.c.h.b16 %v198
    %v220 = vunpack.c.l.b16 %v199
    %v221 = vunpack.c.h.b16 %v199
    %v222 = vunpack.c.l.b16 %v200
    %v223 = vunpack.c.h.b16 %v200
    %v224 = vunpack.c.l.b16 %v201
    %v225 = vunpack.c.h.b16 %v201
    %v226 = vpack.c.b16 %v210, %v210
    %v227 = vpack.c.b16 %v211, %v211
    %v228 = vpack.c.b16 %v212, %v212
    %v229 = vpack.c.b16 %v213, %v213
    %v230 = vpack.c.b16 %v214, %v214
    %v231 = vpack.c.b16 %v215, %v215
    %v232 = vpack.c.b16 %v216, %v216
    %v233 = vpack.c.b16 %v217, %v217
    %v234 = vpack.c.b16 %v218, %v218
    %v235 = vpack.c.b16 %v219, %v219
    %v236 = vpack.c.b16 %v220, %v220
    %v237 = vpack.c.b16 %v221, %v221
    %v238 = vpack.c.b16 %v222, %v222
    %v239 = vpack.c.b16 %v223, %v223
    %v240 = vpack.c.b16 %v224, %v224
    %v241 = vpack.c.b16 %v225, %v225
    %258 = vst [vmem:[#allocation12] sm:$0xf] %v226
    %259 = vst [vmem:[#allocation12 + $0x4] sm:$0xf] %v227
    %260 = vst [vmem:[#allocation12 + $0x8] sm:$0xf] %v228
    %261 = vst [vmem:[#allocation12 + $0xc] sm:$0xf] %v229
    %262 = vst [vmem:[#allocation12 + $0x10] sm:$0xf] %v230
    %263 = vst [vmem:[#allocation12 + $0x14] sm:$0xf] %v231
    %264 = vst [vmem:[#allocation12 + $0x18] sm:$0xf] %v232
    %265 = vst [vmem:[#allocation12 + $0x1c] sm:$0xf] %v233
    %266 = vst [vmem:[#allocation12 + $0x20] sm:$0xf] %v234
    %267 = vst [vmem:[#allocation12 + $0x24] sm:$0xf] %v235
    %268 = vst [vmem:[#allocation12 + $0x28] sm:$0xf] %v236
    %269 = vst [vmem:[#allocation12 + $0x2c] sm:$0xf] %v237
    %270 = vst [vmem:[#allocation12 + $0x30] sm:$0xf] %v238
    %271 = vst [vmem:[#allocation12 + $0x34] sm:$0xf] %v239
    %272 = vst [vmem:[#allocation12 + $0x38] sm:$0xf] %v240
    %273 = vst [vmem:[#allocation12 + $0x3c] sm:$0xf] %v241
    %v274 = vld [vmem:[#allocation2] sm:$0xff]
    %v275 = vld [vmem:[#allocation2 + $0x8] sm:$0xff]
    %v276 = vld [vmem:[#allocation2 + $0x10] sm:$0xff]
    %v277 = vld [vmem:[#allocation2 + $0x18] sm:$0xff]
    %v278 = vld [vmem:[#allocation2 + $0x20] sm:$0xff]
    %v279 = vld [vmem:[#allocation2 + $0x28] sm:$0xff]
    %v280 = vld [vmem:[#allocation2 + $0x30] sm:$0xff]
    %v281 = vld [vmem:[#allocation2 + $0x38] sm:$0xff]
    %v282 = vld [vmem:[#allocation2 + $0x40] sm:$0xff]
    %v283 = vld [vmem:[#allocation2 + $0x48] sm:$0xff]
    %v284 = vld [vmem:[#allocation2 + $0x50] sm:$0xff]
    %v285 = vld [vmem:[#allocation2 + $0x58] sm:$0xff]
    %v286 = vld [vmem:[#allocation2 + $0x60] sm:$0xff]
    %v287 = vld [vmem:[#allocation2 + $0x68] sm:$0xff]
    %v288 = vld [vmem:[#allocation2 + $0x70] sm:$0xff]
    %v289 = vld [vmem:[#allocation2 + $0x78] sm:$0xff]
    %290 = vadd.xlane.f32.xlu0 %v178
    %v291 = vpop.xlane.xlu0 %290
    %292 = vadd.xlane.f32.xlu0 %v179
    %v293 = vpop.xlane.xlu0 %292
    %294 = vadd.xlane.f32.xlu0 %v180
    %v295 = vpop.xlane.xlu0 %294
    %296 = vadd.xlane.f32.xlu0 %v181
    %v297 = vpop.xlane.xlu0 %296
    %298 = vadd.xlane.f32.xlu0 %v182
    %v299 = vpop.xlane.xlu0 %298
    %300 = vadd.xlane.f32.xlu0 %v183
    %v301 = vpop.xlane.xlu0 %300
    %302 = vadd.xlane.f32.xlu0 %v184
    %v303 = vpop.xlane.xlu0 %302
    %304 = vadd.xlane.f32.xlu0 %v185
    %v305 = vpop.xlane.xlu0 %304
    %306 = vadd.xlane.f32.xlu0 %v186
    %v307 = vpop.xlane.xlu0 %306
    %308 = vadd.xlane.f32.xlu0 %v187
    %v309 = vpop.xlane.xlu0 %308
    %310 = vadd.xlane.f32.xlu0 %v188
    %v311 = vpop.xlane.xlu0 %310
    %312 = vadd.xlane.f32.xlu0 %v189
    %v313 = vpop.xlane.xlu0 %312
    %314 = vadd.xlane.f32.xlu0 %v190
    %v315 = vpop.xlane.xlu0 %314
    %316 = vadd.xlane.f32.xlu0 %v191
    %v317 = vpop.xlane.xlu0 %316
    %318 = vadd.xlane.f32.xlu0 %v192
    %v319 = vpop.xlane.xlu0 %318
    %320 = vadd.xlane.f32.xlu0 %v193
    %v321 = vpop.xlane.xlu0 %320
    %v322 = vadd.f32 %v274, %v291
    %v323 = vadd.f32 %v275, %v293
    %v324 = vadd.f32 %v276, %v295
    %v325 = vadd.f32 %v277, %v297
    %v326 = vadd.f32 %v278, %v299
    %v327 = vadd.f32 %v279, %v301
    %v328 = vadd.f32 %v280, %v303
    %v329 = vadd.f32 %v281, %v305
    %v330 = vadd.f32 %v282, %v307
    %v331 = vadd.f32 %v283, %v309
    %v332 = vadd.f32 %v284, %v311
    %v333 = vadd.f32 %v285, %v313
    %v334 = vadd.f32 %v286, %v315
    %v335 = vadd.f32 %v287, %v317
    %v336 = vadd.f32 %v288, %v319
    %v337 = vadd.f32 %v289, %v321
    %vm338 = vcmask 7168
    %339 = vst.msk [vmem:[#allocation2] sm:$0xff] %vm338, %v322
    %340 = vst.msk [vmem:[#allocation2 + $0x8] sm:$0xff] %vm338, %v323
    %341 = vst.msk [vmem:[#allocation2 + $0x10] sm:$0xff] %vm338, %v324
    %342 = vst.msk [vmem:[#allocation2 + $0x18] sm:$0xff] %vm338, %v325
    %343 = vst.msk [vmem:[#allocation2 + $0x20] sm:$0xff] %vm338, %v326
    %344 = vst.msk [vmem:[#allocation2 + $0x28] sm:$0xff] %vm338, %v327
    %345 = vst.msk [vmem:[#allocation2 + $0x30] sm:$0xff] %vm338, %v328
    %346 = vst.msk [vmem:[#allocation2 + $0x38] sm:$0xff] %vm338, %v329
    %347 = vst.msk [vmem:[#allocation2 + $0x40] sm:$0xff] %vm338, %v330
    %348 = vst.msk [vmem:[#allocation2 + $0x48] sm:$0xff] %vm338, %v331
    %349 = vst.msk [vmem:[#allocation2 + $0x50] sm:$0xff] %vm338, %v332
    %350 = vst.msk [vmem:[#allocation2 + $0x58] sm:$0xff] %vm338, %v333
    %351 = vst.msk [vmem:[#allocation2 + $0x60] sm:$0xff] %vm338, %v334
    %352 = vst.msk [vmem:[#allocation2 + $0x68] sm:$0xff] %vm338, %v335
    %353 = vst.msk [vmem:[#allocation2 + $0x70] sm:$0xff] %vm338, %v336
    %354 = vst.msk [vmem:[#allocation2 + $0x78] sm:$0xff] %vm338, %v337
    // Predicated region
    $region46: #{tpu_custom_call.1} parent=1 // pred_check
      %p355 = pneg %p93
    $region47: #{tpu_custom_call.1} parent=1 // pred_check_branch
      %357 = sbr.rel (%p355) target = $region49
    $region48: #{tpu_custom_call.1} parent=1 // pred_region
      %v358 = vld [vmem:[#allocation2] sm:$0xff]
      %v359 = vld [vmem:[#allocation2 + $0x8] sm:$0xff]
      %v360 = vld [vmem:[#allocation2 + $0x10] sm:$0xff]
      %v361 = vld [vmem:[#allocation2 + $0x18] sm:$0xff]
      %v362 = vld [vmem:[#allocation2 + $0x20] sm:$0xff]
      %v363 = vld [vmem:[#allocation2 + $0x28] sm:$0xff]
      %v364 = vld [vmem:[#allocation2 + $0x30] sm:$0xff]
      %v365 = vld [vmem:[#allocation2 + $0x38] sm:$0xff]
      %v366 = vld [vmem:[#allocation2 + $0x40] sm:$0xff]
      %v367 = vld [vmem:[#allocation2 + $0x48] sm:$0xff]
      %v368 = vld [vmem:[#allocation2 + $0x50] sm:$0xff]
      %v369 = vld [vmem:[#allocation2 + $0x58] sm:$0xff]
      %v370 = vld [vmem:[#allocation2 + $0x60] sm:$0xff]
      %v371 = vld [vmem:[#allocation2 + $0x68] sm:$0xff]
      %v372 = vld [vmem:[#allocation2 + $0x70] sm:$0xff]
      %v373 = vld [vmem:[#allocation2 + $0x78] sm:$0xff]
      %v374 = vadd.f32 %v358, 1.0
      %v375 = vadd.f32 %v359, 1.0
      %v376 = vadd.f32 %v360, 1.0
      %v377 = vadd.f32 %v361, 1.0
      %v378 = vadd.f32 %v362, 1.0
      %v379 = vadd.f32 %v363, 1.0
      %v380 = vadd.f32 %v364, 1.0
      %v381 = vadd.f32 %v365, 1.0
      %v382 = vadd.f32 %v366, 1.0
      %v383 = vadd.f32 %v367, 1.0
      %v384 = vadd.f32 %v368, 1.0
      %v385 = vadd.f32 %v369, 1.0
      %v386 = vadd.f32 %v370, 1.0
      %v387 = vadd.f32 %v371, 1.0
      %v388 = vadd.f32 %v372, 1.0
      %v389 = vadd.f32 %v373, 1.0
      %vm390 = vcmp.gt.f32.partialorder %v374, 0.0
      %vm391 = vcmp.gt.f32.partialorder %v375, 0.0
      %vm392 = vcmp.gt.f32.partialorder %v376, 0.0
      %vm393 = vcmp.gt.f32.partialorder %v377, 0.0
      %vm394 = vcmp.gt.f32.partialorder %v378, 0.0
      %vm395 = vcmp.gt.f32.partialorder %v379, 0.0
      %vm396 = vcmp.gt.f32.partialorder %v380, 0.0
      %vm397 = vcmp.gt.f32.partialorder %v381, 0.0
      %vm398 = vcmp.gt.f32.partialorder %v382, 0.0
      %vm399 = vcmp.gt.f32.partialorder %v383, 0.0
      %vm400 = vcmp.gt.f32.partialorder %v384, 0.0
      %vm401 = vcmp.gt.f32.partialorder %v385, 0.0
      %vm402 = vcmp.gt.f32.partialorder %v386, 0.0
      %vm403 = vcmp.gt.f32.partialorder %v387, 0.0
      %vm404 = vcmp.gt.f32.partialorder %v388, 0.0
      %vm405 = vcmp.gt.f32.partialorder %v389, 0.0
      %v406 = vrsqrt.pop %v374
      %v407 = vrsqrt.pop %v375
      %v408 = vrsqrt.pop %v376
      %v409 = vrsqrt.pop %v377
      %v410 = vrsqrt.pop %v378
      %v411 = vrsqrt.pop %v379
      %v412 = vrsqrt.pop %v380
      %v413 = vrsqrt.pop %v381
      %v414 = vrsqrt.pop %v382
      %v415 = vrsqrt.pop %v383
      %v416 = vrsqrt.pop %v384
      %v417 = vrsqrt.pop %v385
      %v418 = vrsqrt.pop %v386
      %v419 = vrsqrt.pop %v387
      %v420 = vrsqrt.pop %v388
      %v421 = vrsqrt.pop %v389
      %v422 = vsel %vm390, %v406, 0.0
      %v423 = vsel %vm391, %v407, 0.0
      %v424 = vsel %vm392, %v408, 0.0
      %v425 = vsel %vm393, %v409, 0.0
      %v426 = vsel %vm394, %v410, 0.0
      %v427 = vsel %vm395, %v411, 0.0
      %v428 = vsel %vm396, %v412, 0.0
      %v429 = vsel %vm397, %v413, 0.0
      %v430 = vsel %vm398, %v414, 0.0
      %v431 = vsel %vm399, %v415, 0.0
      %v432 = vsel %vm400, %v416, 0.0
      %v433 = vsel %vm401, %v417, 0.0
      %v434 = vsel %vm402, %v418, 0.0
      %v435 = vsel %vm403, %v419, 0.0
      %v436 = vsel %vm404, %v420, 0.0
      %v437 = vsel %vm405, %v421, 0.0
      %438 = vst.msk [vmem:[%s6] sm:$0xff] %vm338, %v422
      %439 = vst.msk [vmem:[%s6 + $0x8] sm:$0xff] %vm338, %v423
      %440 = vst.msk [vmem:[%s6 + $0x10] sm:$0xff] %vm338, %v424
      %441 = vst.msk [vmem:[%s6 + $0x18] sm:$0xff] %vm338, %v425
      %442 = vst.msk [vmem:[%s6 + $0x20] sm:$0xff] %vm338, %v426
      %443 = vst.msk [vmem:[%s6 + $0x28] sm:$0xff] %vm338, %v427
      %444 = vst.msk [vmem:[%s6 + $0x30] sm:$0xff] %vm338, %v428
      %445 = vst.msk [vmem:[%s6 + $0x38] sm:$0xff] %vm338, %v429
      %446 = vst.msk [vmem:[%s6 + $0x40] sm:$0xff] %vm338, %v430
      %447 = vst.msk [vmem:[%s6 + $0x48] sm:$0xff] %vm338, %v431
      %448 = vst.msk [vmem:[%s6 + $0x50] sm:$0xff] %vm338, %v432
      %449 = vst.msk [vmem:[%s6 + $0x58] sm:$0xff] %vm338, %v433
      %450 = vst.msk [vmem:[%s6 + $0x60] sm:$0xff] %vm338, %v434
      %451 = vst.msk [vmem:[%s6 + $0x68] sm:$0xff] %vm338, %v435
      %452 = vst.msk [vmem:[%s6 + $0x70] sm:$0xff] %vm338, %v436
      %453 = vst.msk [vmem:[%s6 + $0x78] sm:$0xff] %vm338, %v437
      %v454 = vld [vmem:[#allocation9] sm:$0xff]
      %v455 = vld [vmem:[#allocation9 + $0x8] sm:$0xff]
      %v456 = vld [vmem:[#allocation9 + $0x10] sm:$0xff]
      %v457 = vld [vmem:[#allocation9 + $0x18] sm:$0xff]
      %v458 = vld [vmem:[#allocation9 + $0x20] sm:$0xff]
      %v459 = vld [vmem:[#allocation9 + $0x28] sm:$0xff]
      %v460 = vld [vmem:[#allocation9 + $0x30] sm:$0xff]
      %v461 = vld [vmem:[#allocation9 + $0x38] sm:$0xff]
      %v462 = vld [vmem:[#allocation9 + $0x40] sm:$0xff]
      %v463 = vld [vmem:[#allocation9 + $0x48] sm:$0xff]
      %v464 = vld [vmem:[#allocation9 + $0x50] sm:$0xff]
      %v465 = vld [vmem:[#allocation9 + $0x58] sm:$0xff]
      %v466 = vld [vmem:[#allocation9 + $0x60] sm:$0xff]
      %v467 = vld [vmem:[#allocation9 + $0x68] sm:$0xff]
      %v468 = vld [vmem:[#allocation9 + $0x70] sm:$0xff]
      %v469 = vld [vmem:[#allocation9 + $0x78] sm:$0xff]
      %v470 = vld [vmem:[#allocation11] sm:$0xff]
      %v471 = vld [vmem:[#allocation11 + $0x8] sm:$0xff]
      %v472 = vld [vmem:[#allocation11 + $0x10] sm:$0xff]
      %v473 = vld [vmem:[#allocation11 + $0x18] sm:$0xff]
      %v474 = vld [vmem:[#allocation11 + $0x20] sm:$0xff]
      %v475 = vld [vmem:[#allocation11 + $0x28] sm:$0xff]
      %v476 = vld [vmem:[#allocation11 + $0x30] sm:$0xff]
      %v477 = vld [vmem:[#allocation11 + $0x38] sm:$0xff]
      %v478 = vld [vmem:[#allocation11 + $0x40] sm:$0xff]
      %v479 = vld [vmem:[#allocation11 + $0x48] sm:$0xff]
      %v480 = vld [vmem:[#allocation11 + $0x50] sm:$0xff]
      %v481 = vld [vmem:[#allocation11 + $0x58] sm:$0xff]
      %v482 = vld [vmem:[#allocation11 + $0x60] sm:$0xff]
      %v483 = vld [vmem:[#allocation11 + $0x68] sm:$0xff]
      %v484 = vld [vmem:[#allocation11 + $0x70] sm:$0xff]
      %v485 = vld [vmem:[#allocation11 + $0x78] sm:$0xff]
      %486 = vmatprep.subr.mxu0 0.0
      %487 = vmatpush1.msra.mxu0 %v485
      %488 = vmatprep.subr.mxu0 0.0
      %489 = vmatpush1.msra.mxu0 %v484
      %490 = vmatprep.subr.mxu0 0.0
      %491 = vmatpush1.msra.mxu0 %v483
      %492 = vmatprep.subr.mxu0 0.0
      %493 = vmatpush1.msra.mxu0 %v482
      %494 = vmatprep.subr.mxu0 0.0
      %495 = vmatpush1.msra.mxu0 %v481
      %496 = vmatprep.subr.mxu0 0.0
      %497 = vmatpush1.msra.mxu0 %v480
      %498 = vmatprep.subr.mxu0 0.0
      %499 = vmatpush1.msra.mxu0 %v479
      %500 = vmatprep.subr.mxu0 0.0
      %501 = vmatpush1.msra.mxu0 %v478
      %502 = vmatprep.subr.mxu0 0.0
      %503 = vmatpush1.msra.mxu0 %v477
      %504 = vmatprep.subr.mxu0 0.0
      %505 = vmatpush1.msra.mxu0 %v476
      %506 = vmatprep.subr.mxu0 0.0
      %507 = vmatpush1.msra.mxu0 %v475
      %508 = vmatprep.subr.mxu0 0.0
      %509 = vmatpush1.msra.mxu0 %v474
      %510 = vmatprep.subr.mxu0 0.0
      %511 = vmatpush1.msra.mxu0 %v473
      %512 = vmatprep.subr.mxu0 0.0
      %513 = vmatpush1.msra.mxu0 %v472
      %514 = vmatprep.subr.mxu0 0.0
      %515 = vmatpush1.msra.mxu0 %v471
      %516 = vmatprep.subr.mxu0 0.0
      %517 = vmatpush1.msra.mxu0 %v470
      %518 = vmatprep.subr.mxu0 0.0
      %519 = vmatpush2.msra.mxu0 0.0
      %520 = vmatprep.subr.mxu0 0.0
      %521 = vmatpush2.msra.mxu0 0.0
      %522 = vmatprep.subr.mxu0 0.0
      %523 = vmatpush2.msra.mxu0 0.0
      %524 = vmatprep.subr.mxu0 0.0
      %525 = vmatpush2.msra.mxu0 0.0
      %526 = vmatprep.subr.mxu0 0.0
      %527 = vmatpush2.msra.mxu0 0.0
      %528 = vmatprep.subr.mxu0 0.0
      %529 = vmatpush2.msra.mxu0 0.0
      %530 = vmatprep.subr.mxu0 0.0
      %531 = vmatpush2.msra.mxu0 0.0
      %532 = vmatprep.subr.mxu0 0.0
      %533 = vmatpush2.msra.mxu0 0.0
      %534 = vmatprep.subr.mxu0 0.0
      %535 = vmatpush2.msra.mxu0 0.0
      %536 = vmatprep.subr.mxu0 0.0
      %537 = vmatpush2.msra.mxu0 0.0
      %538 = vmatprep.subr.mxu0 0.0
      %539 = vmatpush2.msra.mxu0 0.0
      %540 = vmatprep.subr.mxu0 0.0
      %541 = vmatpush2.msra.mxu0 0.0
      %542 = vmatprep.subr.mxu0 0.0
      %543 = vmatpush2.msra.mxu0 0.0
      %544 = vmatprep.subr.mxu0 0.0
      %545 = vmatpush2.msra.mxu0 0.0
      %546 = vmatprep.subr.mxu0 0.0
      %547 = vmatpush2.msra.mxu0 0.0
      %548 = vmatprep.subr.mxu0 0.0
      %549 = vmatpush2.msra.mxu0 0.0
      %550 = vmatprep.mubr.f32.mxu0 0.0
      %551 = vmatmul.mubr.f32.gmra.mxu0 %v454
      %v552 = vpop.f32.mrf.mxu0
      %v553 = vadd.f32 0.0, %v552
      %v554 = vpop.f32.mrf.mxu0
      %555 = vmatprep.mubr.f32.mxu0 0.0
      %556 = vmatmul.mubr.f32.gmra.mxu0 %v455
      %v557 = vpop.f32.mrf.mxu0
      %v558 = vadd.f32 0.0, %v557
      %v559 = vpop.f32.mrf.mxu0
      %560 = vmatprep.mubr.f32.mxu0 0.0
      %561 = vmatmul.mubr.f32.gmra.mxu0 %v456
      %v562 = vpop.f32.mrf.mxu0
      %v563 = vadd.f32 0.0, %v562
      %v564 = vpop.f32.mrf.mxu0
      %565 = vmatprep.mubr.f32.mxu0 0.0
      %566 = vmatmul.mubr.f32.gmra.mxu0 %v457
      %v567 = vpop.f32.mrf.mxu0
      %v568 = vadd.f32 0.0, %v567
      %v569 = vpop.f32.mrf.mxu0
      %570 = vmatprep.mubr.f32.mxu0 0.0
      %571 = vmatmul.mubr.f32.gmra.mxu0 %v458
      %v572 = vpop.f32.mrf.mxu0
      %v573 = vadd.f32 0.0, %v572
      %v574 = vpop.f32.mrf.mxu0
      %575 = vmatprep.mubr.f32.mxu0 0.0
      %576 = vmatmul.mubr.f32.gmra.mxu0 %v459
      %v577 = vpop.f32.mrf.mxu0
      %v578 = vadd.f32 0.0, %v577
      %v579 = vpop.f32.mrf.mxu0
      %580 = vmatprep.mubr.f32.mxu0 0.0
      %581 = vmatmul.mubr.f32.gmra.mxu0 %v460
      %v582 = vpop.f32.mrf.mxu0
      %v583 = vadd.f32 0.0, %v582
      %v584 = vpop.f32.mrf.mxu0
      %585 = vmatprep.mubr.f32.mxu0 0.0
      %586 = vmatmul.mubr.f32.gmra.mxu0 %v461
      %v587 = vpop.f32.mrf.mxu0
      %v588 = vadd.f32 0.0, %v587
      %v589 = vpop.f32.mrf.mxu0
      %590 = vmatprep.mubr.f32.mxu0 0.0
      %591 = vmatmul.mubr.f32.gmra.mxu0 %v462
      %v592 = vpop.f32.mrf.mxu0
      %v593 = vadd.f32 0.0, %v592
      %v594 = vpop.f32.mrf.mxu0
      %595 = vmatprep.mubr.f32.mxu0 0.0
      %596 = vmatmul.mubr.f32.gmra.mxu0 %v463
      %v597 = vpop.f32.mrf.mxu0
      %v598 = vadd.f32 0.0, %v597
      %v599 = vpop.f32.mrf.mxu0
      %600 = vmatprep.mubr.f32.mxu0 0.0
      %601 = vmatmul.mubr.f32.gmra.mxu0 %v464
      %v602 = vpop.f32.mrf.mxu0
      %v603 = vadd.f32 0.0, %v602
      %v604 = vpop.f32.mrf.mxu0
      %605 = vmatprep.mubr.f32.mxu0 0.0
      %606 = vmatmul.mubr.f32.gmra.mxu0 %v465
      %v607 = vpop.f32.mrf.mxu0
      %v608 = vadd.f32 0.0, %v607
      %v609 = vpop.f32.mrf.mxu0
      %610 = vmatprep.mubr.f32.mxu0 0.0
      %611 = vmatmul.mubr.f32.gmra.mxu0 %v466
      %v612 = vpop.f32.mrf.mxu0
      %v613 = vadd.f32 0.0, %v612
      %v614 = vpop.f32.mrf.mxu0
      %615 = vmatprep.mubr.f32.mxu0 0.0
      %616 = vmatmul.mubr.f32.gmra.mxu0 %v467
      %v617 = vpop.f32.mrf.mxu0
      %v618 = vadd.f32 0.0, %v617
      %v619 = vpop.f32.mrf.mxu0
      %620 = vmatprep.mubr.f32.mxu0 0.0
      %621 = vmatmul.mubr.f32.gmra.mxu0 %v468
      %v622 = vpop.f32.mrf.mxu0
      %v623 = vadd.f32 0.0, %v622
      %v624 = vpop.f32.mrf.mxu0
      %625 = vmatprep.mubr.f32.mxu0 0.0
      %626 = vmatmul.mubr.f32.gmra.mxu0 %v469
      %v627 = vpop.f32.mrf.mxu0
      %v628 = vadd.f32 0.0, %v627
      %v629 = vpop.f32.mrf.mxu0
      %630 = vdwg.mxu0
      %632 = vset.pattern.permute.xlu0 0
      %633 = vperm.xlu0 %632, %v422
      %v634 = vpop.permute.xlu0 %633
      %637 = vset.pattern.permute.xlu0 0
      %638 = vperm.xlu0 %637, %v423
      %v639 = vpop.permute.xlu0 %638
      %642 = vset.pattern.permute.xlu0 0
      %643 = vperm.xlu0 %642, %v424
      %v644 = vpop.permute.xlu0 %643
      %647 = vset.pattern.permute.xlu0 0
      %648 = vperm.xlu0 %647, %v425
      %v649 = vpop.permute.xlu0 %648
      %652 = vset.pattern.permute.xlu0 0
      %653 = vperm.xlu0 %652, %v426
      %v654 = vpop.permute.xlu0 %653
      %657 = vset.pattern.permute.xlu0 0
      %658 = vperm.xlu0 %657, %v427
      %v659 = vpop.permute.xlu0 %658
      %662 = vset.pattern.permute.xlu0 0
      %663 = vperm.xlu0 %662, %v428
      %v664 = vpop.permute.xlu0 %663
      %667 = vset.pattern.permute.xlu0 0
      %668 = vperm.xlu0 %667, %v429
      %v669 = vpop.permute.xlu0 %668
      %672 = vset.pattern.permute.xlu0 0
      %673 = vperm.xlu0 %672, %v430
      %v674 = vpop.permute.xlu0 %673
      %677 = vset.pattern.permute.xlu0 0
      %678 = vperm.xlu0 %677, %v431
      %v679 = vpop.permute.xlu0 %678
      %682 = vset.pattern.permute.xlu0 0
      %683 = vperm.xlu0 %682, %v432
      %v684 = vpop.permute.xlu0 %683
      %687 = vset.pattern.permute.xlu0 0
      %688 = vperm.xlu0 %687, %v433
      %v689 = vpop.permute.xlu0 %688
      %692 = vset.pattern.permute.xlu0 0
      %693 = vperm.xlu0 %692, %v434
      %v694 = vpop.permute.xlu0 %693
      %697 = vset.pattern.permute.xlu0 0
      %698 = vperm.xlu0 %697, %v435
      %v699 = vpop.permute.xlu0 %698
      %702 = vset.pattern.permute.xlu0 0
      %703 = vperm.xlu0 %702, %v436
      %v704 = vpop.permute.xlu0 %703
      %707 = vset.pattern.permute.xlu0 0
      %708 = vperm.xlu0 %707, %v437
      %v709 = vpop.permute.xlu0 %708
      %v711 = vmul.f32 %v634, %v553
      %v712 = vmul.f32 %v639, %v558
      %v713 = vmul.f32 %v644, %v563
      %v714 = vmul.f32 %v649, %v568
      %v715 = vmul.f32 %v654, %v573
      %v716 = vmul.f32 %v659, %v578
      %v717 = vmul.f32 %v664, %v583
      %v718 = vmul.f32 %v669, %v588
      %v719 = vmul.f32 %v674, %v593
      %v720 = vmul.f32 %v679, %v598
      %v721 = vmul.f32 %v684, %v603
      %v722 = vmul.f32 %v689, %v608
      %v723 = vmul.f32 %v694, %v613
      %v724 = vmul.f32 %v699, %v618
      %v725 = vmul.f32 %v704, %v623
      %v726 = vmul.f32 %v709, %v628
      %v727 = vpack.c.bf16 %v712, %v711
      %v728 = vpack.c.bf16 %v714, %v713
      %v729 = vpack.c.bf16 %v716, %v715
      %v730 = vpack.c.bf16 %v718, %v717
      %v731 = vpack.c.bf16 %v720, %v719
      %v732 = vpack.c.bf16 %v722, %v721
      %v733 = vpack.c.bf16 %v724, %v723
      %v734 = vpack.c.bf16 %v726, %v725
      %v743 = vunpack.c.l.b16 %v727
      %v744 = vunpack.c.h.b16 %v727
      %v745 = vunpack.c.l.b16 %v728
      %v746 = vunpack.c.h.b16 %v728
      %v747 = vunpack.c.l.b16 %v729
      %v748 = vunpack.c.h.b16 %v729
      %v749 = vunpack.c.l.b16 %v730
      %v750 = vunpack.c.h.b16 %v730
      %v751 = vunpack.c.l.b16 %v731
      %v752 = vunpack.c.h.b16 %v731
      %v753 = vunpack.c.l.b16 %v732
      %v754 = vunpack.c.h.b16 %v732
      %v755 = vunpack.c.l.b16 %v733
      %v756 = vunpack.c.h.b16 %v733
      %v757 = vunpack.c.l.b16 %v734
      %v758 = vunpack.c.h.b16 %v734
      %v759 = vpack.c.b16 %v743, %v743
      %v760 = vpack.c.b16 %v744, %v744
      %v761 = vpack.c.b16 %v745, %v745
      %v762 = vpack.c.b16 %v746, %v746
      %v763 = vpack.c.b16 %v747, %v747
      %v764 = vpack.c.b16 %v748, %v748
      %v765 = vpack.c.b16 %v749, %v749
      %v766 = vpack.c.b16 %v750, %v750
      %v767 = vpack.c.b16 %v751, %v751
      %v768 = vpack.c.b16 %v752, %v752
      %v769 = vpack.c.b16 %v753, %v753
      %v770 = vpack.c.b16 %v754, %v754
      %v771 = vpack.c.b16 %v755, %v755
      %v772 = vpack.c.b16 %v756, %v756
      %v773 = vpack.c.b16 %v757, %v757
      %v774 = vpack.c.b16 %v758, %v758
      %791 = vst [vmem:[#allocation13] sm:$0xf] %v759
      %792 = vst [vmem:[#allocation13 + $0x4] sm:$0xf] %v760
      %793 = vst [vmem:[#allocation13 + $0x8] sm:$0xf] %v761
      %794 = vst [vmem:[#allocation13 + $0xc] sm:$0xf] %v762
      %795 = vst [vmem:[#allocation13 + $0x10] sm:$0xf] %v763
      %796 = vst [vmem:[#allocation13 + $0x14] sm:$0xf] %v764
      %797 = vst [vmem:[#allocation13 + $0x18] sm:$0xf] %v765
      %798 = vst [vmem:[#allocation13 + $0x1c] sm:$0xf] %v766
      %799 = vst [vmem:[#allocation13 + $0x20] sm:$0xf] %v767
      %800 = vst [vmem:[#allocation13 + $0x24] sm:$0xf] %v768
      %801 = vst [vmem:[#allocation13 + $0x28] sm:$0xf] %v769
      %802 = vst [vmem:[#allocation13 + $0x2c] sm:$0xf] %v770
      %803 = vst [vmem:[#allocation13 + $0x30] sm:$0xf] %v771
      %804 = vst [vmem:[#allocation13 + $0x34] sm:$0xf] %v772
      %805 = vst [vmem:[#allocation13 + $0x38] sm:$0xf] %v773
      %806 = vst [vmem:[#allocation13 + $0x3c] sm:$0xf] %v774
    $region49: #{tpu_custom_call.1} parent=1 // pred_fallthru
      _
    // Predicated region
    $region50: #{tpu_custom_call.1} parent=1 // pred_check
      _
    $region51: #{tpu_custom_call.1} parent=1 // pred_check_branch
      %808 = sbr.rel (0) target = $region53
    $region52: #{tpu_custom_call.1} parent=1 // pred_region
      %s810 = ssub.s32 1024, 1024
      %811 = vsyncadd [#allocation5], %s810
      %s812 = sshll.u32 [#allocation12], 4
      %s813 = int_to_ptr.vmem [resolvable:$true] %s812
      %818 = dma.vmem_to_hbm [thread:$0]  %s813, 1024, %s5, [#allocation5], 64, 64, 4
    $region53: #{tpu_custom_call.1} parent=1 // pred_fallthru
      _
    // Predicated region
    $region54: #{tpu_custom_call.1} parent=1 // pred_check
      _
    $region55: #{tpu_custom_call.1} parent=1 // pred_check_branch
      %820 = sbr.rel (0) target = $region57
    $region56: #{tpu_custom_call.1} parent=1 // pred_region
      _
    $region57: #{tpu_custom_call.1} parent=1 // pred_fallthru
      _
    // Predicated region
    $region58: #{tpu_custom_call.1} parent=1 // pred_check
      _
    $region59: #{tpu_custom_call.1} parent=1 // pred_check_branch
      %822 = sbr.rel (0) target = $region61
    $region60: #{tpu_custom_call.1} parent=1 // pred_region
      %s824 = ssub.s32 1024, 1024
      %825 = vsyncadd [#allocation14], %s824
      %s826 = sshll.u32 [#allocation13], 4
      %s827 = int_to_ptr.vmem [resolvable:$true] %s826
      %832 = dma.vmem_to_hbm [thread:$0]  %s827, 1024, %s7, [#allocation14], 64, 64, 4
    $region61: #{tpu_custom_call.1} parent=1 // pred_fallthru
      _
    // Predicated region
    $region62: #{tpu_custom_call.1} parent=1 // pred_check
      _
    $region63: #{tpu_custom_call.1} parent=1 // pred_check_branch
      %834 = sbr.rel (0) target = $region65
    $region64: #{tpu_custom_call.1} parent=1 // pred_region
      %835 = dma.done [#allocation5], 1024
    $region65: #{tpu_custom_call.1} parent=1 // pred_fallthru
      _
    // Predicated region
    $region66: #{tpu_custom_call.1} parent=1 // pred_check
      _
    $region67: #{tpu_custom_call.1} parent=1 // pred_check_branch
      %837 = sbr.rel (0) target = $region69
    $region68: #{tpu_custom_call.1} parent=1 // pred_region
      _
    $region69: #{tpu_custom_call.1} parent=1 // pred_fallthru
      _
    // Predicated region
    $region70: #{tpu_custom_call.1} parent=1 // pred_check
      _
    $region71: #{tpu_custom_call.1} parent=1 // pred_check_branch
      %839 = sbr.rel (0) target = $region73
    $region72: #{tpu_custom_call.1} parent=1 // pred_region
      %840 = dma.done [#allocation14], 1024
    $region73: #{tpu_custom_call.1} parent=1 // pred_fallthru
      _
    %841 = vsyncpa [#allocation4], 1
    %842 = vsyncpa [#allocation7], 1
    %843 = vsyncpa [#allocation10], 1
    %844 = vsyncpa [#allocation5], 1
    %845 = vsyncpa [#allocation14], 1

</llo_original>
